<compile_context>
chip_gen: v7x
topology: tpu7x:2x2x1
jax: 0.10.0
libtpu: 0.0.40
codegen_flags: <defaults>
</compile_context>

<pallas_src>
import functools

import jax
import jax.numpy as jnp
from jax.experimental import pallas as pl
from jax.experimental.pallas import tpu as pltpu


# ----------------------------------------------------------------------------
# Secret projection (runs ONCE at __init__; hoisted out of the forward pass)
# ----------------------------------------------------------------------------

def _dense_relu_kernel(s_ref, w_ref, b_ref, o_ref):
    y = jnp.dot(s_ref[...], w_ref[...], preferred_element_type=jnp.float32)
    o_ref[...] = jnp.maximum(y + b_ref[...], 0.0)


def dense_relu(s, w, b):
    """s: (1, K), w: (K, N), b: (1, N) -> (1, N)."""
    return pl.pallas_call(
        _dense_relu_kernel,
        out_shape=jax.ShapeDtypeStruct((s.shape[0], w.shape[1]), jnp.float32),
    )(s, w, b)


# ----------------------------------------------------------------------------
# Fused encoder kernel.
# Feature maps live as (channels, H*W): channels on sublanes, flattened spatial
# on lanes (lane-dense matmul N and dense output stores).
# ----------------------------------------------------------------------------

def _shift_flat(a, dy, dx, W, npix):
    """result[:, p] = a[:, p + dy*W + dx]  (circular); entries that wrapped
    across a row / the image are zeroed by the caller's per-tap mask so the
    result matches a zero-padded 'same' conv tap."""
    s = dy * W + dx
    if s == 0:
        return a
    return pltpu.roll(a, shift=(-s) % npix, axis=1)


def _dw_fused_kernel(x_ref, sec_ref, mask_ref,
                     w1_ref, b1_ref, w2_ref, b2_ref, w3_ref, b3_ref,
                     o_ref, col1_ref, col2_ref,
                     *, C, Cs, hidden, H, W, alpha):
    npix = H * W
    cin1 = C + Cs
    taps = tuple((dy, dx) for dy in (-1, 0, 1) for dx in (-1, 0, 1))

    x_img = x_ref[0].astype(jnp.float32)          # (C,  H*W)  this batch element
    sec = sec_ref[...]                            # (Cs, H*W)  fixed secret map
    masks = mask_ref[...]                         # (9,  H*W)  per-tap validity

    # ---- conv1: im2col (9*(C+Cs), H*W) assembled in VMEM scratch, one deep-K dot.
    #      (also performs the concat(image, secret) in-kernel: rows [img | sec])
    for t, (dy, dx) in enumerate(taps):
        m = masks[t:t + 1, :]
        base = t * cin1
        col1_ref[base:base + C, :] = _shift_flat(x_img, dy, dx, W, npix) * m
        col1_ref[base + C:base + cin1, :] = _shift_flat(sec, dy, dx, W, npix) * m

    h1 = jnp.dot(w1_ref[...], col1_ref[...].astype(jnp.bfloat16),
                 preferred_element_type=jnp.float32)
    h1 = jnp.maximum(h1 + b1_ref[...], 0.0)       # (hidden, H*W), stays in VMEM

    # ---- conv2: im2col (9*hidden, H*W) in bf16 scratch (32-row aligned offsets).
    for t, (dy, dx) in enumerate(taps):
        m = masks[t:t + 1, :]
        col2_ref[t * hidden:(t + 1) * hidden, :] = (
            _shift_flat(h1, dy, dx, W, npix) * m).astype(jnp.bfloat16)

    h2 = jnp.dot(w2_ref[...], col2_ref[...],
                 preferred_element_type=jnp.float32)
    h2 = jnp.maximum(h2 + b2_ref[...], 0.0)       # (hidden, H*W)

    # ---- 1x1 projection + residual add (skip path kept in f32).
    res = jnp.dot(w3_ref[...], h2.astype(jnp.bfloat16),
                  preferred_element_type=jnp.float32) + b3_ref[...]
    o_ref[0] = (x_img + alpha * res).astype(o_ref.dtype)


def dw_encode(x_flat, sec_flat, tap_masks, w1, b1, w2, b2, w3, b3,
              *, H, W, hidden, alpha):
    B, C, npix = x_flat.shape
    Cs = sec_flat.shape[0]
    cin1 = C + Cs
    kernel = functools.partial(_dw_fused_kernel, C=C, Cs=Cs, hidden=hidden,
                               H=H, W=W, alpha=float(alpha))
    return pl.pallas_call(
        kernel,
        out_shape=jax.ShapeDtypeStruct((B, C, npix), jnp.float32),
        grid=(B,),
        in_specs=[
            pl.BlockSpec((1, C, npix), lambda b: (b, 0, 0)),       # image (NCHW, flat)
            pl.BlockSpec((Cs, npix), lambda b: (0, 0)),            # secret map
            pl.BlockSpec((9, npix), lambda b: (0, 0)),             # tap masks
            pl.BlockSpec((hidden, 9 * cin1), lambda b: (0, 0)),    # w1
            pl.BlockSpec((hidden, 1), lambda b: (0, 0)),           # b1
            pl.BlockSpec((hidden, 9 * hidden), lambda b: (0, 0)),  # w2
            pl.BlockSpec((hidden, 1), lambda b: (0, 0)),           # b2
            pl.BlockSpec((C, hidden), lambda b: (0, 0)),           # w3
            pl.BlockSpec((C, 1), lambda b: (0, 0)),                # b3
        ],
        out_specs=pl.BlockSpec((1, C, npix), lambda b: (b, 0, 0)),
        scratch_shapes=[
            pltpu.VMEM((9 * cin1, npix), jnp.float32),     # conv1 im2col
            pltpu.VMEM((9 * hidden, npix), jnp.bfloat16),  # conv2 im2col
        ],
        compiler_params=pltpu.CompilerParams(dimension_semantics=("parallel",)),
    )(x_flat, sec_flat, tap_masks, w1, b1, w2, b2, w3, b3)


# ----------------------------------------------------------------------------
# DWEncoder (parameters initialized deterministically in-script)
# ----------------------------------------------------------------------------

class DWEncoder:
    def __init__(self, image_shape, secret_len=100, multi_level_embed=None,
                 embed_factor=1.0, pixel_shuffle_sample=False, hidden=32,
                 secret_channels=8, key=None):
        if multi_level_embed is None:
            multi_level_embed = [True, False, False, False, False]
        C, H, W = image_shape
        self.image_shape = (C, H, W)
        self.secret_len = secret_len
        self.multi_level_embed = multi_level_embed
        self.embed_factor = 1.0 if embed_factor is None else float(embed_factor)
        self.pixel_shuffle_sample = pixel_shuffle_sample
        self.hidden = hidden
        self.secret_channels = secret_channels
        # TODO(synk): multi-level embedding at deeper feature scales
        #             (multi_level_embed[1:]) not exercised by the defaults.
        # TODO(synk): pixel_shuffle_sample upsampling path; nearest is used.
        # TODO(synk): spatial strip tiling (2-row halo) for large H*W so the
        #             im2col scratch stays within VMEM on v7x (64 MiB).

        hs, ws = max(1, H // 4), max(1, W // 4)
        self.hs, self.ws = hs, ws
        Cs = secret_channels
        cin1 = C + Cs

        if key is None:
            key = jax.random.PRNGKey(0)
        ks = jax.random.split(key, 8)
        f32, bf16 = jnp.float32, jnp.bfloat16

        # Fixed secret vector (a learned buffer in the real model; forward takes only x).
        self.secret = (jax.random.uniform(ks[0], (1, secret_len)) > 0.5).astype(f32)

        # Linear(secret_len -> Cs*hs*ws)
        self.w_sec = 0.1 * jax.random.normal(ks[1], (secret_len, Cs * hs * ws), f32)
        self.b_sec = jnp.zeros((1, Cs * hs * ws), f32)

        # conv1: 3x3 (C+Cs)->hidden ; conv2: 3x3 hidden->hidden ; conv3: 1x1 hidden->C.
        # Stored pre-reshaped to the (Cout, 9*Cin) matmul layout with
        # k = (dy*3 + dx)*Cin + cin, matching the kernel's im2col row order.
        w1 = 0.1 * jax.random.normal(ks[2], (3, 3, cin1, hidden), f32)
        w2 = 0.1 * jax.random.normal(ks[3], (3, 3, hidden, hidden), f32)
        w3 = 0.1 * jax.random.normal(ks[4], (hidden, C), f32)
        self.w1 = jnp.transpose(w1, (3, 0, 1, 2)).reshape(hidden, 9 * cin1).astype(bf16)
        self.w2 = jnp.transpose(w2, (3, 0, 1, 2)).reshape(hidden, 9 * hidden).astype(bf16)
        self.w3 = jnp.transpose(w3, (1, 0)).astype(bf16)                    # (C, hidden)
        self.b1 = 0.01 * jax.random.normal(ks[5], (hidden, 1), f32)
        self.b2 = 0.01 * jax.random.normal(ks[6], (hidden, 1), f32)
        self.b3 = 0.01 * jax.random.normal(ks[7], (C, 1), f32)

        # --- secret path hoisted out of the forward: Pallas dense (runs once),
        # nearest-neighbour upsample to full res, flattened to (Cs, H*W). ---
        sec_feat = dense_relu(self.secret, self.w_sec, self.b_sec)          # (1, Cs*hs*ws)
        sec_lr = sec_feat.reshape(Cs, hs, ws)                               # channels-first
        iy = (jnp.arange(H) * hs) // H                                      # robust for any H, W
        ix = (jnp.arange(W) * ws) // W
        sec_full = sec_lr[:, iy, :][:, :, ix]                               # (Cs, H, W)
        if not multi_level_embed[0]:
            sec_full = jnp.zeros_like(sec_full)
        self.sec_flat = sec_full.reshape(Cs, H * W).astype(f32)

        # Per-tap validity masks for zero-padded 'same' conv boundary handling;
        # tap order (dy, dx) over {-1,0,1}^2 matches the kernel's im2col order.
        yy = jnp.arange(H).reshape(H, 1)
        xx = jnp.arange(W).reshape(1, W)
        masks = []
        for dy in (-1, 0, 1):
            for dx in (-1, 0, 1):
                valid = ((yy + dy >= 0) & (yy + dy < H) &
                         (xx + dx >= 0) & (xx + dx < W))
                masks.append(valid.reshape(H * W))
        self.tap_masks = jnp.stack(masks, axis=0).astype(f32)               # (9, H*W)

    def __call__(self, x):
        # x: (B, C, H, W) NCHW — consumed/produced directly (no transposes).
        B, C, H, W = x.shape
        assert (C, H, W) == self.image_shape
        x_flat = x.reshape(B, C, H * W).astype(jnp.float32)   # contiguous: free reshape
        out_flat = dw_encode(x_flat, self.sec_flat, self.tap_masks,
                             self.w1, self.b1, self.w2, self.b2, self.w3, self.b3,
                             H=H, W=W, hidden=self.hidden, alpha=self.embed_factor)
        return out_flat.reshape(B, C, H, W)


# ----------------------------------------------------------------------------
# main
# ----------------------------------------------------------------------------

if __name__ == "__main__":
    root = jax.random.PRNGKey(0)
    k_x, k_p = jax.random.split(root)

    B, C, H, W = 2, 3, 16, 16
    secret_len = 16
    x = jax.random.normal(k_x, (B, C, H, W), jnp.float32)

    enc = DWEncoder(image_shape=(C, H, W), secret_len=secret_len,
                    multi_level_embed=[True, False, False, False, False],
                    embed_factor=1.0, pixel_shuffle_sample=False, key=k_p)

    out = jax.block_until_ready(enc(x))
    assert out.shape == (B, C, H, W), out.shape
    assert out.dtype == jnp.float32
    assert bool(jnp.all(jnp.isfinite(out)))
    print("KERNEL_OK")
</pallas_src>

<mosaic_0001>
module attributes {stable_mosaic.version = 11 : i64} {
  func.func @_dense_relu_kernel(%arg0: memref<1x16xf32, #tpu.memory_space<vmem>>, %arg1: memref<16x128xf32, #tpu.memory_space<vmem>>, %arg2: memref<1x128xf32, #tpu.memory_space<vmem>>, %arg3: memref<1x128xf32, #tpu.memory_space<vmem>>) attributes {dimension_semantics = [], scalar_prefetch = 0 : i64, scratch_operands = 0 : i64, tpu.core_type = #tpu.core_type<tc>} {
    %c0 = arith.constant 0 : index
    %c0_0 = arith.constant 0 : index
    %0 = vector.load %arg0[%c0, %c0_0] : memref<1x16xf32, #tpu.memory_space<vmem>>, vector<1x16xf32>
    %c0_1 = arith.constant 0 : index
    %c0_2 = arith.constant 0 : index
    %1 = vector.load %arg1[%c0_1, %c0_2] : memref<16x128xf32, #tpu.memory_space<vmem>>, vector<16x128xf32>
    %cst = arith.constant dense<0.000000e+00> : vector<1x128xf32>
    %2 = tpu.matmul %0, %1, %cst {dimension_numbers = #tpu.dot_dimension_numbers<[1], [0], [0], [1], [0, 0, 1, 1], [], []>} : vector<1x16xf32>, vector<16x128xf32>, vector<1x128xf32> -> vector<1x128xf32>
    %c0_3 = arith.constant 0 : index
    %c0_4 = arith.constant 0 : index
    %3 = vector.load %arg2[%c0_3, %c0_4] : memref<1x128xf32, #tpu.memory_space<vmem>>, vector<1x128xf32>
    %4 = arith.addf %2, %3 : vector<1x128xf32>
    %cst_5 = arith.constant 0.000000e+00 : f32
    %5 = vector.broadcast %cst_5 : f32 to vector<1x128xf32>
    %6 = arith.maximumf %4, %5 : vector<1x128xf32>
    %c0_6 = arith.constant 0 : index
    %c0_7 = arith.constant 0 : index
    %7 = vector.load %arg3[%c0_6, %c0_7] : memref<1x128xf32, #tpu.memory_space<vmem>>, vector<1x128xf32>
    tpu.vector_store %arg3[%c0_6, %c0_7], %6 {strides = array<i32>} : memref<1x128xf32, #tpu.memory_space<vmem>>, vector<1x128xf32>,
    return
  }
}

</mosaic_0001>

<llo_original>
// kernel: tpu_custom_call.1
$region0: #{tpu_custom_call.1}
  #allocation0 [shape = 'u32[]', space=smem, size = 0x4, offset = 0x4, fixed_abs, tag = 'smem constant byte address 0x4 - core index']
  #allocation1 [shape = 'u32[144,128]{1,0:T(1,128)}', space=vmem, size = 0x12000, scoped, tag = 'internal scratch']
  %s0 = inlined_call_operand.hbm [shape: f32[1,16], index: 0, kind: input, shape index: {}]
  %s1 = inlined_call_operand.hbm [shape: f32[16,128], index: 1, kind: input, shape index: {}]
  %s2 = inlined_call_operand.vmem [shape: f32[1,128], index: 2, kind: input, shape index: {}]
  %s3 = inlined_call_operand.hbm [shape: f32[1,128], index: 3, kind: output, shape index: {}]
  %s4 = sld [smem:[#allocation0]]
  $region30: #{tpu_custom_call.1} parent=0
    _
  %s6 = ssub.s32 1, %s4
  %s7 = scalar_select 0, %s6, %s4
  $region1: #{tpu_custom_call.1} parent=0
    #allocation2 [shape = 'u8[512]{0}', space=vmem, size = 0x400, scoped, tag = 'input window, operand 0, single buffered']
    #allocation3 [shape = 's32[1]{0}', space=sflag, size = 0x4, scoped, tag = 'scoped memory for tpu_custom_call.1']
    #allocation4 [shape = 's32[1]{0}', space=sflag, size = 0x4, scoped, tag = 'scoped memory for tpu_custom_call.1']
    #allocation5 [shape = 'u8[8192]{0}', space=vmem, size = 0x2000, scoped, tag = 'input window, operand 1, single buffered']
    #allocation6 [shape = 's32[1]{0}', space=sflag, size = 0x4, scoped, tag = 'scoped memory for tpu_custom_call.1']
    #allocation7 [shape = 'u8[512]{0}', space=vmem, size = 0x400, scoped, tag = 'output window, operand 0, single buffered']
    %8 = vsyncpa [#allocation3], 0
    %9 = vsyncpa [#allocation6], 0
    %10 = vsyncpa [#allocation4], 0
    // Predicated region
    $region2: #{tpu_custom_call.1} parent=1 // pred_check
      _
    $region3: #{tpu_custom_call.1} parent=1 // pred_check_branch
      %12 = sbr.rel (0) target = $region5
    $region4: #{tpu_custom_call.1} parent=1 // pred_region
      %s14 = ssub.s32 16, 16
      %15 = vsyncadd [#allocation3], %s14
      %s17 = sshll.u32 [#allocation2], 4
      %s18 = int_to_ptr.vmem [resolvable:$true] %s17
      %20 = dma.hbm_to_vmem [thread:$0]  %s0, 16, %s18, [#allocation3]
    $region5: #{tpu_custom_call.1} parent=1 // pred_fallthru
      _
    // Predicated region
    $region6: #{tpu_custom_call.1} parent=1 // pred_check
      _
    $region7: #{tpu_custom_call.1} parent=1 // pred_check_branch
      %22 = sbr.rel (0) target = $region9
    $region8: #{tpu_custom_call.1} parent=1 // pred_region
      %s24 = ssub.s32 256, 256
      %25 = vsyncadd [#allocation6], %s24
      %s26 = sshll.u32 [#allocation5], 4
      %s27 = int_to_ptr.vmem [resolvable:$true] %s26
      %32 = dma.hbm_to_vmem [thread:$0]  %s1, 256, %s27, [#allocation6], 128, 128, 8
    $region9: #{tpu_custom_call.1} parent=1 // pred_fallthru
      _
    // Predicated region
    $region10: #{tpu_custom_call.1} parent=1 // pred_check
      _
    $region11: #{tpu_custom_call.1} parent=1 // pred_check_branch
      %34 = sbr.rel (0) target = $region13
    $region12: #{tpu_custom_call.1} parent=1 // pred_region
      _
    $region13: #{tpu_custom_call.1} parent=1 // pred_fallthru
      _
    // Predicated region
    $region14: #{tpu_custom_call.1} parent=1 // pred_check
      _
    $region15: #{tpu_custom_call.1} parent=1 // pred_check_branch
      %36 = sbr.rel (0) target = $region17
    $region16: #{tpu_custom_call.1} parent=1 // pred_region
      %37 = dma.done [#allocation3], 16
    $region17: #{tpu_custom_call.1} parent=1 // pred_fallthru
      _
    // Predicated region
    $region18: #{tpu_custom_call.1} parent=1 // pred_check
      _
    $region19: #{tpu_custom_call.1} parent=1 // pred_check_branch
      %39 = sbr.rel (0) target = $region21
    $region20: #{tpu_custom_call.1} parent=1 // pred_region
      %40 = dma.done [#allocation6], 256
    $region21: #{tpu_custom_call.1} parent=1 // pred_fallthru
      _
    %v41 = vld [vmem:[#allocation2] sm:$0x1]
    %v42 = vld [vmem:[#allocation5] sm:$0xff]
    %v43 = vld [vmem:[#allocation5 + $0x8] sm:$0xff]
    %v44 = vld [vmem:[%s2] sm:$0x1]
    %vm45 = vcmask 130048
    %v47 = vsel %vm45, %v41, 0
    %49 = vmatprep.subr.mxu0 0.0
    %50 = vmatpush1.msra.mxu0 %v42
    %51 = vmatprep.subr.mxu0 0.0
    %52 = vmatpush1.msra.mxu0 %v43
    %53 = vmatprep.subr.mxu0 0.0
    %54 = vmatpush1.msra.mxu0 0.0
    %55 = vmatprep.subr.mxu0 0.0
    %56 = vmatpush1.msra.mxu0 0.0
    %57 = vmatprep.subr.mxu0 0.0
    %58 = vmatpush1.msra.mxu0 0.0
    %59 = vmatprep.subr.mxu0 0.0
    %60 = vmatpush1.msra.mxu0 0.0
    %61 = vmatprep.subr.mxu0 0.0
    %62 = vmatpush1.msra.mxu0 0.0
    %63 = vmatprep.subr.mxu0 0.0
    %64 = vmatpush1.msra.mxu0 0.0
    %65 = vmatprep.subr.mxu0 0.0
    %66 = vmatpush1.msra.mxu0 0.0
    %67 = vmatprep.subr.mxu0 0.0
    %68 = vmatpush1.msra.mxu0 0.0
    %69 = vmatprep.subr.mxu0 0.0
    %70 = vmatpush1.msra.mxu0 0.0
    %71 = vmatprep.subr.mxu0 0.0
    %72 = vmatpush1.msra.mxu0 0.0
    %73 = vmatprep.subr.mxu0 0.0
    %74 = vmatpush1.msra.mxu0 0.0
    %75 = vmatprep.subr.mxu0 0.0
    %76 = vmatpush1.msra.mxu0 0.0
    %77 = vmatprep.subr.mxu0 0.0
    %78 = vmatpush1.msra.mxu0 0.0
    %79 = vmatprep.subr.mxu0 0.0
    %80 = vmatpush1.msra.mxu0 0.0
    %81 = vmatprep.subr.mxu0 0.0
    %82 = vmatpush1.msra.mxu0 0.0
    %83 = vmatprep.subr.mxu0 0.0
    %84 = vmatpush1.msra.mxu0 0.0
    %85 = vmatprep.subr.mxu0 0.0
    %86 = vmatpush1.msra.mxu0 0.0
    %87 = vmatprep.subr.mxu0 0.0
    %88 = vmatpush1.msra.mxu0 0.0
    %89 = vmatprep.subr.mxu0 0.0
    %90 = vmatpush1.msra.mxu0 0.0
    %91 = vmatprep.subr.mxu0 0.0
    %92 = vmatpush1.msra.mxu0 0.0
    %93 = vmatprep.subr.mxu0 0.0
    %94 = vmatpush1.msra.mxu0 0.0
    %95 = vmatprep.subr.mxu0 0.0
    %96 = vmatpush1.msra.mxu0 0.0
    %97 = vmatprep.subr.mxu0 0.0
    %98 = vmatpush1.msra.mxu0 0.0
    %99 = vmatprep.subr.mxu0 0.0
    %100 = vmatpush1.msra.mxu0 0.0
    %101 = vmatprep.subr.mxu0 0.0
    %102 = vmatpush1.msra.mxu0 0.0
    %103 = vmatprep.subr.mxu0 0.0
    %104 = vmatpush1.msra.mxu0 0.0
    %105 = vmatprep.subr.mxu0 0.0
    %106 = vmatpush1.msra.mxu0 0.0
    %107 = vmatprep.subr.mxu0 0.0
    %108 = vmatpush1.msra.mxu0 0.0
    %109 = vmatprep.subr.mxu0 0.0
    %110 = vmatpush1.msra.mxu0 0.0
    %111 = vmatprep.subr.mxu0 0.0
    %112 = vmatpush1.msra.mxu0 0.0
    %113 = vmatprep.mubr.f32.mxu0 0.0
    %114 = vmatmul.mubr.f32.gmra.mrb[0].mxu0 %v47
    %v115 = vpop.f32.mrb[0].mxu0
    %v116 = vadd.f32 %v44, %v115
    %v117 = vpop.f32.mrb[0].mxu0
    %118 = vdwg.mxu0
    %v119 = vmax.f32 %v116, 0.0
    %120 = vst [vmem:[#allocation7] sm:$0x1] %v119
    // Predicated region
    $region22: #{tpu_custom_call.1} parent=1 // pred_check
      _
    $region23: #{tpu_custom_call.1} parent=1 // pred_check_branch
      %122 = sbr.rel (0) target = $region25
    $region24: #{tpu_custom_call.1} parent=1 // pred_region
      %s124 = ssub.s32 16, 16
      %125 = vsyncadd [#allocation4], %s124
      %s127 = sshll.u32 [#allocation7], 4
      %s128 = int_to_ptr.vmem [resolvable:$true] %s127
      %130 = dma.vmem_to_hbm [thread:$0]  %s128, 16, %s3, [#allocation4]
    $region25: #{tpu_custom_call.1} parent=1 // pred_fallthru
      _
    // Predicated region
    $region26: #{tpu_custom_call.1} parent=1 // pred_check
      _
    $region27: #{tpu_custom_call.1} parent=1 // pred_check_branch
      %132 = sbr.rel (0) target = $region29
    $region28: #{tpu_custom_call.1} parent=1 // pred_region
      %133 = dma.done [#allocation4], 16
    $region29: #{tpu_custom_call.1} parent=1 // pred_fallthru
      _
    %134 = vsyncpa [#allocation3], 1
    %135 = vsyncpa [#allocation6], 1
    %136 = vsyncpa [#allocation4], 1

</llo_original>
